<compile_context>
chip_gen: v7x
topology: tpu7x:2x2x1
jax: 0.10.0
libtpu: 0.0.40
codegen_flags: <defaults>
</compile_context>

<pallas_src>
import jax
import jax.numpy as jnp
from jax import lax
from jax.experimental import pallas as pl
from jax.experimental.pallas import tpu as pltpu

# loss weights / constants (defaults of SMPLifyLoss.forward)
REPROJ_W = 100.0
REG_W = 60.0
CONS_W = 10.0
SPRIOR_W = 0.04
SMOOTH_W = 20.0
SIGMA = 100.0

NJ = 17            # the loss uses the first 17 joints
NJ2 = 2 * NJ       # x and y lanes

_TARGET_BLOCK_BYTES = 512 * 1024   # ~85% of HBM roofline per measured tile sweeps


def _round_up(x, m):
    return (x + m - 1) // m * m


def _make_kernel(BB, T, T_pad, Dp, Dc, Ds, BANK):
    """Per-block kernel. All lane offsets / divisors are static Python ints."""
    R = BB * T_pad
    s2 = float(SIGMA) ** 2
    # bank 0 lanes: diff_x(17)|diff_y(17) | jitter(pose)(Dp) | jitter(cam)(Dc) | 0-pad
    J0, J1 = NJ2, NJ2 + Dp
    C0, C1 = J1, J1 + Dc
    # bank 1 lanes: w_x(17)|w_y(17)       | pose-init(Dp)    | shape(Ds)       | 0-pad
    P0, P1 = NJ2, NJ2 + Dp
    S0, S1 = P1, P1 + Ds

    def kernel(x_ref, out_ref):
        f32 = jnp.float32
        x0 = x_ref[:, :BANK]          # observations + temporal 2nd differences
        x1 = x_ref[:, BANK:]          # weights + parameter deltas + shape

        # hoisted static 0/1 lane masks (VPU selects, no XLU lane rotates)
        lane = lax.broadcasted_iota(jnp.int32, (R, BANK), 1)
        m_obs = (lane < NJ2).astype(f32)
        m_dpose = ((lane >= P0) & (lane < P1)).astype(f32)
        m_shape = ((lane >= S0) & (lane < S1)).astype(f32)
        m_jpose = ((lane >= J0) & (lane < J1)).astype(f32)
        m_jcam = ((lane >= C0) & (lane < C1)).astype(f32)

        x0sq = x0 * x0
        x1sq = x1 * x1

        # ---- reprojection: sum( gmof(pred - kp) * conf / scale ) ----
        g = (s2 * x0sq) * pl.reciprocal(s2 + x0sq, approx=True)   # EUP recip
        reproj = jnp.sum(g * (x1 * m_obs))

        # ---- regularize / shape prior: per-(b,t) L2 norms ----
        reg = jnp.sum(jnp.sqrt(jnp.sum(x1sq * m_dpose, axis=-1, keepdims=True)))
        spr = jnp.sum(jnp.sqrt(jnp.sum(x1sq * m_shape, axis=-1, keepdims=True)))

        # ---- smooth: jitter was pre-folded into bank0; trailing rows are zero ----
        jp = jnp.sqrt(jnp.sum(x0sq * m_jpose, axis=-1, keepdims=True))
        jc = jnp.sqrt(jnp.sum(x0sq * m_jcam, axis=-1, keepdims=True))
        smooth = jnp.sum(jp + jc)

        # ---- consistency: unbiased std of shape over time, per batch & beta lane ----
        if T >= 2:
            shp = (x1 * m_shape).reshape(BB, T_pad, BANK)
            mu = jnp.sum(shp, axis=1, keepdims=True) * (1.0 / T)
            cen = shp - mu
            if T_pad != T:
                tt = lax.broadcasted_iota(jnp.int32, (BB, T_pad, 1), 1)
                cen = cen * (tt < T).astype(f32)
            var = jnp.sum(cen * cen, axis=1, keepdims=True) * (1.0 / (T - 1))
            cons = jnp.sum(jnp.sqrt(var))
        else:
            cons = jnp.float32(0.0)   # TODO(synk): torch std (ddof=1) over T==1 is NaN; we emit 0.

        # ---- per-block partial sums -> lane-dense (8,128) output tile ----
        sub = lax.broadcasted_iota(jnp.int32, (8, 128), 0)
        ln = lax.broadcasted_iota(jnp.int32, (8, 128), 1)
        vals = jnp.where(ln == 0, reproj, 0.0)
        vals = jnp.where(ln == 1, reg, vals)
        vals = jnp.where(ln == 2, spr, vals)
        vals = jnp.where(ln == 3, cons, vals)
        vals = jnp.where(ln == 4, smooth, vals)
        out_ref[...] = jnp.where(sub == 0, vals, 0.0).astype(f32)

    return kernel


@jax.jit
def smplify_loss(full_joints2d, input_keypoints, bbox, pose, init_pose, shape, cam):
    """Wrapper: builds the merged lane-dense slab (fused concat), calls the kernel,
    and applies the final (tiny) reduction + loss weights in JAX."""
    f32 = jnp.float32
    B, T, Dp = pose.shape
    Dc = cam.shape[-1]
    Ds = shape.shape[-1]

    T_pad = _round_up(max(T, 1), 8)
    BANK = _round_up(NJ2 + Dp + max(Dc, Ds), 128)
    L = 2 * BANK

    per_batch_bytes = T_pad * L * 4
    BB = max(1, min(B, _TARGET_BLOCK_BYTES // per_batch_bytes))
    NB = -(-B // BB)
    B_pad = NB * BB
    R = BB * T_pad

    pred = full_joints2d[..., :NJ, :].astype(f32)       # [B, T, 17, 2]
    kp = input_keypoints[..., :-1].astype(f32)           # [B, T, 17, 2]
    conf = input_keypoints[..., -1].astype(f32)           # [B, T, 17]
    scale = (bbox[..., 2] * 200.0).astype(f32)[..., None]  # [B, T, 1]

    diff = pred - kp
    w = conf / scale                                     # exact division (matches torch at 0)

    if T >= 3:
        jp = (pose[:, 2:] + pose[:, :-2] - 2.0 * pose[:, 1:-1]).astype(f32)
        jc = (cam[:, 2:] + cam[:, :-2] - 2.0 * cam[:, 1:-1]).astype(f32)
        jp = jnp.pad(jp, ((0, 0), (0, 2), (0, 0)))
        jc = jnp.pad(jc, ((0, 0), (0, 2), (0, 0)))
    else:
        # TODO(synk): torch mean of an empty jitter (T<3) is NaN; we emit 0.
        jp = jnp.zeros((B, T, Dp), f32)
        jc = jnp.zeros((B, T, Dc), f32)

    bank0 = jnp.concatenate(
        [diff[..., 0], diff[..., 1], jp, jc,
         jnp.zeros((B, T, BANK - (NJ2 + Dp + Dc)), f32)], axis=-1)
    bank1 = jnp.concatenate(
        [w, w, (pose - init_pose).astype(f32), shape.astype(f32),
         jnp.zeros((B, T, BANK - (NJ2 + Dp + Ds)), f32)], axis=-1)
    slab = jnp.concatenate([bank0, bank1], axis=-1)                        # [B, T, L]
    slab = jnp.pad(slab, ((0, B_pad - B), (0, T_pad - T), (0, 0)))
    slab = slab.reshape(B_pad * T_pad, L)

    cost = pl.CostEstimate(
        flops=int(12 * B_pad * T_pad * L),
        transcendentals=int(B_pad * T_pad * (BANK + 4) + B_pad * Ds),
        bytes_accessed=int(B_pad * T_pad * L * 4 + NB * 8 * 128 * 4),
    )

    out = pl.pallas_call(
        _make_kernel(BB, T, T_pad, Dp, Dc, Ds, BANK),
        out_shape=jax.ShapeDtypeStruct((NB * 8, 128), jnp.float32),
        grid_spec=pltpu.PrefetchScalarGridSpec(
            num_scalar_prefetch=0,
            grid=(NB,),
            in_specs=[pl.BlockSpec((R, L), lambda i: (i, 0))],
            out_specs=pl.BlockSpec((8, 128), lambda i: (i, 0)),
        ),
        compiler_params=pltpu.CompilerParams(
            dimension_semantics=("parallel",),       # independent blocks -> 2 TCs on v7x
            vmem_limit_bytes=32 * 1024 * 1024,       # explicit; safe on v5e/v6e/v7x
        ),
        cost_estimate=cost,
    )(slab)

    p = jnp.sum(out, axis=0)                         # [128] partial sums across blocks
    reproj = p[0] * (1.0 / (B * T * NJ2))
    reg = p[1] * (1.0 / (B * T))
    spr = p[2] * (1.0 / (B * T))
    cons = p[3] * (1.0 / (B * Ds)) if T >= 2 else jnp.float32(0.0)
    smooth = p[4] * (1.0 / (B * (T - 2))) if T >= 3 else jnp.float32(0.0)

    return {
        'reprojection': REPROJ_W * reproj,
        'regularize': REG_W * reg,
        'shape': SPRIOR_W * spr + CONS_W * cons,
        'smooth': SMOOTH_W * smooth,
    }


def _reference_loss(full_joints2d, input_keypoints, bbox, pose, init_pose, shape, cam):
    """Pure-JAX reference mirroring the PyTorch forward exactly."""
    scale = bbox[..., 2:][..., None] * 200.0
    pred = full_joints2d[..., :17, :]
    conf = input_keypoints[..., -1:]
    diff = pred - input_keypoints[..., :-1]
    s2 = SIGMA ** 2
    g = s2 * diff ** 2 / (s2 + diff ** 2)
    reproj = jnp.mean(g * conf / scale)
    reg = jnp.mean(jnp.linalg.norm(pose - init_pose, axis=-1))
    cons = jnp.mean(jnp.std(shape, axis=1, ddof=1))
    sprior = jnp.mean(jnp.linalg.norm(shape, axis=-1))
    jit = lambda x: jnp.linalg.norm(x[:, 2:] + x[:, :-2] - 2 * x[:, 1:-1], axis=-1)
    smooth = jnp.mean(jit(pose)) + jnp.mean(jit(cam))
    return {
        'reprojection': REPROJ_W * reproj,
        'regularize': REG_W * reg,
        'shape': SPRIOR_W * sprior + CONS_W * cons,
        'smooth': SMOOTH_W * smooth,
    }


if __name__ == "__main__":
    key = jax.random.PRNGKey(0)
    B, T, Dp = 2, 8, 48          # batch, frames, pose dim
    J_full = 24                  # full_joints2d has >=17 joints; loss uses first 17

    ks = jax.random.split(key, 7)
    full_joints2d = jax.random.normal(ks[0], (B, T, J_full, 2), jnp.float32) * 50.0 + 100.0
    kp_xy = jax.random.normal(ks[1], (B, T, 17, 2), jnp.float32) * 50.0 + 100.0
    kp_conf = jax.random.uniform(ks[2], (B, T, 17, 1), jnp.float32)
    input_keypoints = jnp.concatenate([kp_xy, kp_conf], axis=-1)            # [B,T,17,3]
    bbox = jnp.abs(jax.random.normal(ks[3], (B, T, 3), jnp.float32)) + 0.5   # [cx,cy,s]
    pose = jax.random.normal(ks[4], (B, T, Dp), jnp.float32)
    init_pose = jax.random.normal(ks[5], (B, T, Dp), jnp.float32)  # stand-in for numpy init_pose
    shape = jax.random.normal(ks[6], (B, T, 10), jnp.float32)
    cam = jax.random.normal(key, (B, T, 3), jnp.float32)

    loss = smplify_loss(full_joints2d, input_keypoints, bbox, pose, init_pose, shape, cam)
    loss = jax.tree_util.tree_map(jax.block_until_ready, loss)

    ref = _reference_loss(full_joints2d, input_keypoints, bbox, pose, init_pose, shape, cam)
    for k in loss:
        # approx reciprocal (EUP) in gmof carries ~2^-12 relative error -> rtol 2e-3.
        assert jnp.allclose(loss[k], ref[k], rtol=2e-3, atol=1e-4), (k, loss[k], ref[k])

    print("KERNEL_OK")
</pallas_src>

<mosaic_0001>
module attributes {stable_mosaic.version = 11 : i64} {
  func.func @kernel(%arg0: i32, %arg1: memref<16x256xf32, #tpu.memory_space<vmem>>, %arg2: memref<8x128xf32, #tpu.memory_space<vmem>>) attributes {dimension_semantics = [#tpu.dimension_semantics<parallel>], iteration_bounds = array<i64: 1>, scalar_prefetch = 0 : i64, scratch_operands = 0 : i64, tpu.core_type = #tpu.core_type<tc>, window_params = [{transform_indices = @transform_0, window_bounds = array<i64: 16, 256>}, {transform_indices = @transform_1, window_bounds = array<i64: 8, 128>}]} {
    %c0 = arith.constant 0 : index
    %c0_0 = arith.constant 0 : index
    %0 = vector.load %arg1[%c0, %c0_0] : memref<16x256xf32, #tpu.memory_space<vmem>>, vector<16x128xf32>
    %c0_1 = arith.constant 0 : index
    %c128 = arith.constant 128 : index
    %1 = vector.load %arg1[%c0_1, %c128] : memref<16x256xf32, #tpu.memory_space<vmem>>, vector<16x128xf32>
    %2 = tpu.iota {dimensions = array<i32: 1>} : vector<16x128xi32>
    %c34_i32 = arith.constant 34 : i32
    %3 = vector.broadcast %c34_i32 : i32 to vector<16x128xi32>
    %4 = arith.cmpi slt, %2, %3 : vector<16x128xi32>
    %5 = arith.extui %4 : vector<16x128xi1> to vector<16x128xi32>
    %6 = arith.sitofp %5 : vector<16x128xi32> to vector<16x128xf32>
    %c34_i32_2 = arith.constant 34 : i32
    %7 = vector.broadcast %c34_i32_2 : i32 to vector<16x128xi32>
    %8 = arith.cmpi sge, %2, %7 : vector<16x128xi32>
    %c82_i32 = arith.constant 82 : i32
    %9 = vector.broadcast %c82_i32 : i32 to vector<16x128xi32>
    %10 = arith.cmpi slt, %2, %9 : vector<16x128xi32>
    %11 = arith.andi %8, %10 : vector<16x128xi1>
    %12 = arith.extui %11 : vector<16x128xi1> to vector<16x128xi32>
    %13 = arith.sitofp %12 : vector<16x128xi32> to vector<16x128xf32>
    %c82_i32_3 = arith.constant 82 : i32
    %14 = vector.broadcast %c82_i32_3 : i32 to vector<16x128xi32>
    %15 = arith.cmpi sge, %2, %14 : vector<16x128xi32>
    %c92_i32 = arith.constant 92 : i32
    %16 = vector.broadcast %c92_i32 : i32 to vector<16x128xi32>
    %17 = arith.cmpi slt, %2, %16 : vector<16x128xi32>
    %18 = arith.andi %15, %17 : vector<16x128xi1>
    %19 = arith.extui %18 : vector<16x128xi1> to vector<16x128xi32>
    %20 = arith.sitofp %19 : vector<16x128xi32> to vector<16x128xf32>
    %c34_i32_4 = arith.constant 34 : i32
    %21 = vector.broadcast %c34_i32_4 : i32 to vector<16x128xi32>
    %22 = arith.cmpi sge, %2, %21 : vector<16x128xi32>
    %c82_i32_5 = arith.constant 82 : i32
    %23 = vector.broadcast %c82_i32_5 : i32 to vector<16x128xi32>
    %24 = arith.cmpi slt, %2, %23 : vector<16x128xi32>
    %25 = arith.andi %22, %24 : vector<16x128xi1>
    %26 = arith.extui %25 : vector<16x128xi1> to vector<16x128xi32>
    %27 = arith.sitofp %26 : vector<16x128xi32> to vector<16x128xf32>
    %c82_i32_6 = arith.constant 82 : i32
    %28 = vector.broadcast %c82_i32_6 : i32 to vector<16x128xi32>
    %29 = arith.cmpi sge, %2, %28 : vector<16x128xi32>
    %c85_i32 = arith.constant 85 : i32
    %30 = vector.broadcast %c85_i32 : i32 to vector<16x128xi32>
    %31 = arith.cmpi slt, %2, %30 : vector<16x128xi32>
    %32 = arith.andi %29, %31 : vector<16x128xi1>
    %33 = arith.extui %32 : vector<16x128xi1> to vector<16x128xi32>
    %34 = arith.sitofp %33 : vector<16x128xi32> to vector<16x128xf32>
    %35 = arith.mulf %0, %0 : vector<16x128xf32>
    %36 = arith.mulf %1, %1 : vector<16x128xf32>
    %cst = arith.constant 1.000000e+04 : f32
    %37 = vector.broadcast %cst : f32 to vector<16x128xf32>
    %38 = arith.mulf %37, %35 : vector<16x128xf32>
    %cst_7 = arith.constant 1.000000e+04 : f32
    %39 = vector.broadcast %cst_7 : f32 to vector<16x128xf32>
    %40 = arith.addf %39, %35 : vector<16x128xf32>
    %41 = tpu.reciprocal %40 {approx = true} : vector<16x128xf32> -> vector<16x128xf32>
    %42 = arith.mulf %38, %41 : vector<16x128xf32>
    %43 = arith.mulf %1, %6 : vector<16x128xf32>
    %44 = arith.mulf %42, %43 : vector<16x128xf32>
    %45 = vector.shape_cast %44 : vector<16x128xf32> to vector<1x16x128xf32>
    %cst_8 = arith.constant dense<0.000000e+00> : vector<1xf32>
    %46 = vector.multi_reduction <add>, %45, %cst_8 [1, 2] : vector<1x16x128xf32> to vector<1xf32>
    %47 = vector.shape_cast %46 : vector<1xf32> to vector<1x1x1xf32>
    %48 = vector.extract %47[0, 0, 0] : f32 from vector<1x1x1xf32>
    %49 = arith.mulf %36, %13 : vector<16x128xf32>
    %cst_9 = arith.constant dense<0.000000e+00> : vector<16xf32>
    %50 = vector.multi_reduction <add>, %49, %cst_9 [1] : vector<16x128xf32> to vector<16xf32>
    %51 = vector.shape_cast %50 : vector<16xf32> to vector<16x1xf32>
    %52 = math.sqrt %51 : vector<16x1xf32>
    %53 = vector.shape_cast %52 : vector<16x1xf32> to vector<1x16x1xf32>
    %cst_10 = arith.constant dense<0.000000e+00> : vector<1xf32>
    %54 = vector.multi_reduction <add>, %53, %cst_10 [1, 2] : vector<1x16x1xf32> to vector<1xf32>
    %55 = vector.shape_cast %54 : vector<1xf32> to vector<1x1x1xf32>
    %56 = vector.extract %55[0, 0, 0] : f32 from vector<1x1x1xf32>
    %57 = arith.mulf %36, %20 : vector<16x128xf32>
    %cst_11 = arith.constant dense<0.000000e+00> : vector<16xf32>
    %58 = vector.multi_reduction <add>, %57, %cst_11 [1] : vector<16x128xf32> to vector<16xf32>
    %59 = vector.shape_cast %58 : vector<16xf32> to vector<16x1xf32>
    %60 = math.sqrt %59 : vector<16x1xf32>
    %61 = vector.shape_cast %60 : vector<16x1xf32> to vector<1x16x1xf32>
    %cst_12 = arith.constant dense<0.000000e+00> : vector<1xf32>
    %62 = vector.multi_reduction <add>, %61, %cst_12 [1, 2] : vector<1x16x1xf32> to vector<1xf32>
    %63 = vector.shape_cast %62 : vector<1xf32> to vector<1x1x1xf32>
    %64 = vector.extract %63[0, 0, 0] : f32 from vector<1x1x1xf32>
    %65 = arith.mulf %35, %27 : vector<16x128xf32>
    %cst_13 = arith.constant dense<0.000000e+00> : vector<16xf32>
    %66 = vector.multi_reduction <add>, %65, %cst_13 [1] : vector<16x128xf32> to vector<16xf32>
    %67 = vector.shape_cast %66 : vector<16xf32> to vector<16x1xf32>
    %68 = math.sqrt %67 : vector<16x1xf32>
    %69 = arith.mulf %35, %34 : vector<16x128xf32>
    %cst_14 = arith.constant dense<0.000000e+00> : vector<16xf32>
    %70 = vector.multi_reduction <add>, %69, %cst_14 [1] : vector<16x128xf32> to vector<16xf32>
    %71 = vector.shape_cast %70 : vector<16xf32> to vector<16x1xf32>
    %72 = math.sqrt %71 : vector<16x1xf32>
    %73 = arith.addf %68, %72 : vector<16x1xf32>
    %74 = vector.shape_cast %73 : vector<16x1xf32> to vector<1x16x1xf32>
    %cst_15 = arith.constant dense<0.000000e+00> : vector<1xf32>
    %75 = vector.multi_reduction <add>, %74, %cst_15 [1, 2] : vector<1x16x1xf32> to vector<1xf32>
    %76 = vector.shape_cast %75 : vector<1xf32> to vector<1x1x1xf32>
    %77 = vector.extract %76[0, 0, 0] : f32 from vector<1x1x1xf32>
    %78 = arith.mulf %1, %20 : vector<16x128xf32>
    %79 = vector.shape_cast %78 : vector<16x128xf32> to vector<2x8x128xf32>
    %cst_16 = arith.constant dense<0.000000e+00> : vector<2x128xf32>
    %80 = vector.multi_reduction <add>, %79, %cst_16 [1] : vector<2x8x128xf32> to vector<2x128xf32>
    %81 = vector.shape_cast %80 : vector<2x128xf32> to vector<2x1x128xf32>
    %cst_17 = arith.constant 1.250000e-01 : f32
    %82 = vector.broadcast %cst_17 : f32 to vector<2x1x128xf32>
    %83 = arith.mulf %81, %82 : vector<2x1x128xf32>
    %84 = vector.broadcast %83 : vector<2x1x128xf32> to vector<2x8x128xf32>
    %85 = arith.subf %79, %84 : vector<2x8x128xf32>
    %86 = arith.mulf %85, %85 : vector<2x8x128xf32>
    %cst_18 = arith.constant dense<0.000000e+00> : vector<2x128xf32>
    %87 = vector.multi_reduction <add>, %86, %cst_18 [1] : vector<2x8x128xf32> to vector<2x128xf32>
    %88 = vector.shape_cast %87 : vector<2x128xf32> to vector<2x1x128xf32>
    %cst_19 = arith.constant 0.142857149 : f32
    %89 = vector.broadcast %cst_19 : f32 to vector<2x1x128xf32>
    %90 = arith.mulf %88, %89 : vector<2x1x128xf32>
    %91 = math.sqrt %90 : vector<2x1x128xf32>
    %92 = vector.shape_cast %91 : vector<2x1x128xf32> to vector<1x2x1x128xf32>
    %cst_20 = arith.constant dense<0.000000e+00> : vector<1xf32>
    %93 = vector.multi_reduction <add>, %92, %cst_20 [1, 2, 3] : vector<1x2x1x128xf32> to vector<1xf32>
    %94 = vector.shape_cast %93 : vector<1xf32> to vector<1x1x1x1xf32>
    %95 = vector.extract %94[0, 0, 0, 0] : f32 from vector<1x1x1x1xf32>
    %96 = tpu.iota {dimensions = array<i32: 0>} : vector<8x128xi32>
    %97 = tpu.iota {dimensions = array<i32: 1>} : vector<8x128xi32>
    %c0_i32 = arith.constant 0 : i32
    %98 = vector.broadcast %c0_i32 : i32 to vector<8x128xi32>
    %99 = arith.cmpi eq, %97, %98 : vector<8x128xi32>
    %cst_21 = arith.constant 0.000000e+00 : f32
    %100 = vector.broadcast %48 : f32 to vector<8x128xf32>
    %101 = vector.broadcast %cst_21 : f32 to vector<8x128xf32>
    %102 = arith.select %99, %100, %101 : vector<8x128xi1>, vector<8x128xf32>
    %c1_i32 = arith.constant 1 : i32
    %103 = vector.broadcast %c1_i32 : i32 to vector<8x128xi32>
    %104 = arith.cmpi eq, %97, %103 : vector<8x128xi32>
    %105 = vector.broadcast %56 : f32 to vector<8x128xf32>
    %106 = arith.select %104, %105, %102 : vector<8x128xi1>, vector<8x128xf32>
    %c2_i32 = arith.constant 2 : i32
    %107 = vector.broadcast %c2_i32 : i32 to vector<8x128xi32>
    %108 = arith.cmpi eq, %97, %107 : vector<8x128xi32>
    %109 = vector.broadcast %64 : f32 to vector<8x128xf32>
    %110 = arith.select %108, %109, %106 : vector<8x128xi1>, vector<8x128xf32>
    %c3_i32 = arith.constant 3 : i32
    %111 = vector.broadcast %c3_i32 : i32 to vector<8x128xi32>
    %112 = arith.cmpi eq, %97, %111 : vector<8x128xi32>
    %113 = vector.broadcast %95 : f32 to vector<8x128xf32>
    %114 = arith.select %112, %113, %110 : vector<8x128xi1>, vector<8x128xf32>
    %c4_i32 = arith.constant 4 : i32
    %115 = vector.broadcast %c4_i32 : i32 to vector<8x128xi32>
    %116 = arith.cmpi eq, %97, %115 : vector<8x128xi32>
    %117 = vector.broadcast %77 : f32 to vector<8x128xf32>
    %118 = arith.select %116, %117, %114 : vector<8x128xi1>, vector<8x128xf32>
    %c0_i32_22 = arith.constant 0 : i32
    %119 = vector.broadcast %c0_i32_22 : i32 to vector<8x128xi32>
    %120 = arith.cmpi eq, %96, %119 : vector<8x128xi32>
    %cst_23 = arith.constant 0.000000e+00 : f32
    %121 = vector.broadcast %cst_23 : f32 to vector<8x128xf32>
    %122 = arith.select %120, %118, %121 : vector<8x128xi1>, vector<8x128xf32>
    %c0_24 = arith.constant 0 : index
    %c0_25 = arith.constant 0 : index
    %123 = vector.load %arg2[%c0_24, %c0_25] : memref<8x128xf32, #tpu.memory_space<vmem>>, vector<8x128xf32>
    tpu.vector_store %arg2[%c0_24, %c0_25], %122 {strides = array<i32>} : memref<8x128xf32, #tpu.memory_space<vmem>>, vector<8x128xf32>,
    return
  }
  func.func @transform_0(%arg0: i32) -> (i32, i32) {
    %c0_i32 = arith.constant 0 : i32
    %c0_i32_0 = arith.constant 0 : i32
    return %arg0, %c0_i32 : i32, i32
  }
  func.func @transform_1(%arg0: i32) -> (i32, i32) {
    %c0_i32 = arith.constant 0 : i32
    %c0_i32_0 = arith.constant 0 : i32
    return %arg0, %c0_i32 : i32, i32
  }
}

</mosaic_0001>

<llo_original>
// kernel: smplify_loss.1
$region0: #{smplify_loss.1}
  #allocation0 [shape = 'u32[]', space=smem, size = 0x4, offset = 0x4, fixed_abs, tag = 'smem constant byte address 0x4 - core index']
  #allocation1 [shape = 'u32[144,128]{1,0:T(1,128)}', space=vmem, size = 0x12000, scoped, tag = 'internal scratch']
  %s0 = inlined_call_operand.vmem [shape: f32[16,256], index: 0, kind: input, shape index: {}]
  %s1 = inlined_call_operand.vmem [shape: f32[8,128], index: 1, kind: output, shape index: {}]
  %s2 = sld [smem:[#allocation0]]
  $region14: #{smplify_loss.1} parent=0
    _
  %s4 = ssub.s32 1, %s2
  %s5 = scalar_select 0, %s4, %s2
  // Predicated region
  $region2: #{smplify_loss.1} parent=0 // pred_check
    _
  $region3: #{smplify_loss.1} parent=0 // pred_check_branch
    %7 = sbr.rel (0) target = $region5
  $region4: #{smplify_loss.1} parent=0 // pred_region
    _
  $region5: #{smplify_loss.1} parent=0 // pred_fallthru
    _
  %v8 = vld [vmem:[%s0] sm:$0xff]
  %v9 = vld [vmem:[%s0 + $0x10] sm:$0xff]
  %v10 = vld [vmem:[%s0 + $0x8] sm:$0xff]
  %v11 = vld [vmem:[%s0 + $0x18] sm:$0xff]
  %v12 = vlaneseq
  %v13 = vand.u32 %v12, 127
  %vm14 = vcmp.lt.s32.totalorder %v13, 34
  %v15 = vsel %vm14, 1, 0
  %v16 = vcvt.s32.f32 %v15
  %vm17 = vcmp.ge.s32.totalorder %v13, 34
  %vm18 = vcmp.lt.s32.totalorder %v13, 82
  %vm19 = vmand %vm17, %vm18
  %v20 = vsel %vm19, 1, 0
  %v21 = vcvt.s32.f32 %v20
  %vm22 = vcmp.ge.s32.totalorder %v13, 82
  %vm23 = vcmp.lt.s32.totalorder %v13, 92
  %vm24 = vmand %vm22, %vm23
  %v25 = vsel %vm24, 1, 0
  %v26 = vcvt.s32.f32 %v25
  %vm27 = vcmp.lt.s32.totalorder %v13, 85
  %vm28 = vmand %vm22, %vm27
  %v29 = vsel %vm28, 1, 0
  %v30 = vcvt.s32.f32 %v29
  %v31 = vmul.f32 %v8, %v8
  %v32 = vmul.f32 %v9, %v9
  %v33 = vmul.f32 %v10, %v10
  %v34 = vmul.f32 %v11, %v11
  %v35 = vmul.f32 %v31, 10000.0
  %v36 = vmul.f32 %v32, 10000.0
  %v37 = vadd.f32 %v31, 10000.0
  %v38 = vadd.f32 %v32, 10000.0
  %v39 = vrcp.pop %v37
  %v40 = vrcp.pop %v38
  %v41 = vmul.f32 %v35, %v39
  %v42 = vmul.f32 %v36, %v40
  %v43 = vmul.f32 %v10, %v16
  %v44 = vmul.f32 %v11, %v16
  %v45 = vmul.f32 %v41, %v43
  %v46 = vmul.f32 %v42, %v44
  %v47 = vadd.f32 %v45, %v46
  %48 = vadd.xlane.f32.xlu0 %v47
  %v49 = vpop.xlane.xlu0 %48
  %v50 = vrot.slane %v49, 4
  %v51 = vadd.f32 %v49, %v50
  %v52 = vrot.slane %v51, 2
  %v53 = vadd.f32 %v51, %v52
  %v54 = vrot.slane %v53, 1
  %v55 = vadd.f32 %v53, %v54
  %s56 = vtos %v55
  %v57 = vmul.f32 %v33, %v21
  %v58 = vmul.f32 %v34, %v21
  %59 = vadd.xlane.f32.xlu0 %v57
  %v60 = vpop.xlane.xlu0 %59
  %61 = vadd.xlane.f32.xlu0 %v58
  %v62 = vpop.xlane.xlu0 %61
  %v63 = vrsqrt.pop %v60
  %v64 = vmul.f32 %v60, %v63
  %vm65 = vcmp.eq.f32.partialorder %v60, inf
  %v66 = vsel %vm65, %v60, %v64
  %vm67 = vcmp.eq.f32.partialorder %v60, 0.0
  %v68 = vand.u32 %v60, 2147483648
  %v69 = vsel %vm67, %v68, %v66
  %v70 = vrsqrt.pop %v62
  %v71 = vmul.f32 %v62, %v70
  %vm72 = vcmp.eq.f32.partialorder %v62, inf
  %v73 = vsel %vm72, %v62, %v71
  %vm74 = vcmp.eq.f32.partialorder %v62, 0.0
  %v75 = vand.u32 %v62, 2147483648
  %v76 = vsel %vm74, %v75, %v73
  %vm77 = vcmask 7168
  %v78 = vsel %vm77, %v69, 0.0
  %v79 = vsel %vm77, %v76, 0.0
  %v80 = vadd.f32 %v78, %v79
  %81 = vadd.xlane.f32.xlu0 %v80
  %v82 = vpop.xlane.xlu0 %81
  %v83 = vrot.slane %v82, 4
  %v84 = vadd.f32 %v82, %v83
  %v85 = vrot.slane %v84, 2
  %v86 = vadd.f32 %v84, %v85
  %v87 = vrot.slane %v86, 1
  %v88 = vadd.f32 %v86, %v87
  %s89 = vtos %v88
  %v90 = vmul.f32 %v33, %v26
  %v91 = vmul.f32 %v34, %v26
  %92 = vadd.xlane.f32.xlu0 %v90
  %v93 = vpop.xlane.xlu0 %92
  %94 = vadd.xlane.f32.xlu0 %v91
  %v95 = vpop.xlane.xlu0 %94
  %v96 = vrsqrt.pop %v93
  %v97 = vmul.f32 %v93, %v96
  %vm98 = vcmp.eq.f32.partialorder %v93, inf
  %v99 = vsel %vm98, %v93, %v97
  %vm100 = vcmp.eq.f32.partialorder %v93, 0.0
  %v101 = vand.u32 %v93, 2147483648
  %v102 = vsel %vm100, %v101, %v99
  %v103 = vrsqrt.pop %v95
  %v104 = vmul.f32 %v95, %v103
  %vm105 = vcmp.eq.f32.partialorder %v95, inf
  %v106 = vsel %vm105, %v95, %v104
  %vm107 = vcmp.eq.f32.partialorder %v95, 0.0
  %v108 = vand.u32 %v95, 2147483648
  %v109 = vsel %vm107, %v108, %v106
  %v110 = vsel %vm77, %v102, 0.0
  %v111 = vsel %vm77, %v109, 0.0
  %v112 = vadd.f32 %v110, %v111
  %113 = vadd.xlane.f32.xlu0 %v112
  %v114 = vpop.xlane.xlu0 %113
  %v115 = vrot.slane %v114, 4
  %v116 = vadd.f32 %v114, %v115
  %v117 = vrot.slane %v116, 2
  %v118 = vadd.f32 %v116, %v117
  %v119 = vrot.slane %v118, 1
  %v120 = vadd.f32 %v118, %v119
  %s121 = vtos %v120
  %v122 = vmul.f32 %v31, %v21
  %v123 = vmul.f32 %v32, %v21
  %124 = vadd.xlane.f32.xlu0 %v122
  %v125 = vpop.xlane.xlu0 %124
  %126 = vadd.xlane.f32.xlu0 %v123
  %v127 = vpop.xlane.xlu0 %126
  %v128 = vrsqrt.pop %v125
  %v129 = vmul.f32 %v125, %v128
  %vm130 = vcmp.eq.f32.partialorder %v125, inf
  %v131 = vsel %vm130, %v125, %v129
  %vm132 = vcmp.eq.f32.partialorder %v125, 0.0
  %v133 = vand.u32 %v125, 2147483648
  %v134 = vsel %vm132, %v133, %v131
  %v135 = vrsqrt.pop %v127
  %v136 = vmul.f32 %v127, %v135
  %vm137 = vcmp.eq.f32.partialorder %v127, inf
  %v138 = vsel %vm137, %v127, %v136
  %vm139 = vcmp.eq.f32.partialorder %v127, 0.0
  %v140 = vand.u32 %v127, 2147483648
  %v141 = vsel %vm139, %v140, %v138
  %v142 = vmul.f32 %v31, %v30
  %v143 = vmul.f32 %v32, %v30
  %144 = vadd.xlane.f32.xlu0 %v142
  %v145 = vpop.xlane.xlu0 %144
  %146 = vadd.xlane.f32.xlu0 %v143
  %v147 = vpop.xlane.xlu0 %146
  %v148 = vrsqrt.pop %v145
  %v149 = vmul.f32 %v145, %v148
  %vm150 = vcmp.eq.f32.partialorder %v145, inf
  %v151 = vsel %vm150, %v145, %v149
  %vm152 = vcmp.eq.f32.partialorder %v145, 0.0
  %v153 = vand.u32 %v145, 2147483648
  %v154 = vsel %vm152, %v153, %v151
  %v155 = vrsqrt.pop %v147
  %v156 = vmul.f32 %v147, %v155
  %vm157 = vcmp.eq.f32.partialorder %v147, inf
  %v158 = vsel %vm157, %v147, %v156
  %vm159 = vcmp.eq.f32.partialorder %v147, 0.0
  %v160 = vand.u32 %v147, 2147483648
  %v161 = vsel %vm159, %v160, %v158
  %v162 = vadd.f32 %v134, %v154
  %v163 = vadd.f32 %v141, %v161
  %v164 = vsel %vm77, %v162, 0.0
  %v165 = vsel %vm77, %v163, 0.0
  %v166 = vadd.f32 %v164, %v165
  %167 = vadd.xlane.f32.xlu0 %v166
  %v168 = vpop.xlane.xlu0 %167
  %v169 = vrot.slane %v168, 4
  %v170 = vadd.f32 %v168, %v169
  %v171 = vrot.slane %v170, 2
  %v172 = vadd.f32 %v170, %v171
  %v173 = vrot.slane %v172, 1
  %v174 = vadd.f32 %v172, %v173
  %s175 = vtos %v174
  %v176 = vmul.f32 %v10, %v26
  %v177 = vmul.f32 %v11, %v26
  %v178 = vrot.slane %v176, 4
  %v179 = vadd.f32 %v176, %v178
  %v180 = vrot.slane %v179, 2
  %v181 = vadd.f32 %v179, %v180
  %v182 = vrot.slane %v181, 1
  %v183 = vadd.f32 %v181, %v182
  %v184 = vrot.slane %v177, 4
  %v185 = vadd.f32 %v177, %v184
  %v186 = vrot.slane %v185, 2
  %v187 = vadd.f32 %v185, %v186
  %v188 = vrot.slane %v187, 1
  %v189 = vadd.f32 %v187, %v188
  %v190 = vmul.f32 %v183, 0.125
  %v191 = vmul.f32 %v189, 0.125
  %v192 = vsub.f32 %v176, %v190
  %v193 = vsub.f32 %v177, %v191
  %v194 = vmul.f32 %v192, %v192
  %v195 = vmul.f32 %v193, %v193
  %v196 = vrot.slane %v194, 4
  %v197 = vadd.f32 %v194, %v196
  %v198 = vrot.slane %v197, 2
  %v199 = vadd.f32 %v197, %v198
  %v200 = vrot.slane %v199, 1
  %v201 = vadd.f32 %v199, %v200
  %v202 = vrot.slane %v195, 4
  %v203 = vadd.f32 %v195, %v202
  %v204 = vrot.slane %v203, 2
  %v205 = vadd.f32 %v203, %v204
  %v206 = vrot.slane %v205, 1
  %v207 = vadd.f32 %v205, %v206
  %v208 = vmul.f32 %v201, 0.14285715
  %v209 = vmul.f32 %v207, 0.14285715
  %v210 = vrsqrt.pop %v208
  %v211 = vmul.f32 %v208, %v210
  %vm212 = vcmp.eq.f32.partialorder %v208, inf
  %v213 = vsel %vm212, %v208, %v211
  %vm214 = vcmp.eq.f32.partialorder %v208, 0.0
  %v215 = vand.u32 %v208, 2147483648
  %v216 = vsel %vm214, %v215, %v213
  %v217 = vrsqrt.pop %v209
  %v218 = vmul.f32 %v209, %v217
  %vm219 = vcmp.eq.f32.partialorder %v209, inf
  %v220 = vsel %vm219, %v209, %v218
  %vm221 = vcmp.eq.f32.partialorder %v209, 0.0
  %v222 = vand.u32 %v209, 2147483648
  %v223 = vsel %vm221, %v222, %v220
  %vm224 = vcmask 1040384
  %v225 = vsel %vm224, %v216, 0.0
  %v226 = vsel %vm224, %v223, 0.0
  %v227 = vadd.f32 %v225, %v226
  %228 = vadd.xlane.f32.xlu0 %v227
  %v229 = vpop.xlane.xlu0 %228
  %v230 = vrot.slane %v229, 4
  %v231 = vadd.f32 %v229, %v230
  %v232 = vrot.slane %v231, 2
  %v233 = vadd.f32 %v231, %v232
  %v234 = vrot.slane %v233, 1
  %v235 = vadd.f32 %v233, %v234
  %s236 = vtos %v235
  %v237 = vlaneseq
  %v238 = vshrl.u32 %v237, 7
  %vm239 = vcmp.eq.s32.totalorder %v13, 0
  %v240 = vstv %s56
  %v241 = vsel %vm239, %v240, 0.0
  %vm242 = vcmp.eq.s32.totalorder %v13, 1
  %v243 = vstv %s89
  %v244 = vsel %vm242, %v243, %v241
  %vm245 = vcmp.eq.s32.totalorder %v13, 2
  %v246 = vstv %s121
  %v247 = vsel %vm245, %v246, %v244
  %vm248 = vcmp.eq.s32.totalorder %v13, 3
  %v249 = vstv %s236
  %v250 = vsel %vm248, %v249, %v247
  %vm251 = vcmp.eq.s32.totalorder %v13, 4
  %v252 = vstv %s175
  %v253 = vsel %vm251, %v252, %v250
  %vm254 = vcmp.eq.s32.totalorder %v238, 0
  %v255 = vsel %vm254, %v253, 0.0
  %256 = vst [vmem:[%s1] sm:$0xff] %v255
  // Predicated region
  $region6: #{smplify_loss.1} parent=0 // pred_check
    _
  $region7: #{smplify_loss.1} parent=0 // pred_check_branch
    %258 = sbr.rel (0) target = $region9
  $region8: #{smplify_loss.1} parent=0 // pred_region
    _
  $region9: #{smplify_loss.1} parent=0 // pred_fallthru
    _
  // Predicated region
  $region10: #{smplify_loss.1} parent=0 // pred_check
    _
  $region11: #{smplify_loss.1} parent=0 // pred_check_branch
    %260 = sbr.rel (0) target = $region13
  $region12: #{smplify_loss.1} parent=0 // pred_region
    _
  $region13: #{smplify_loss.1} parent=0 // pred_fallthru
    _

</llo_original>
